<compile_context>
chip_gen: v7x
topology: tpu7x:2x2x1
jax: 0.10.0
libtpu: 0.0.40
codegen_flags: <defaults>
</compile_context>

<pallas_src>
import functools

import jax
import jax.numpy as jnp
from jax.experimental import pallas as pl
from jax.experimental.pallas import tpu as pltpu


def _se_kernel(x_ref, w1t_ref, w2t_ref, o_ref, *, inv_len):
    # x_ref:   (bt, C, L)  batch-tile of the input, native dtype
    # w1t_ref: (C, H)      Linear(C -> H) weight, transposed
    # w2t_ref: (H, C)      Linear(H -> C) weight, transposed
    # o_ref:   (bt, C, L)
    x = x_ref[...]                                              # native dtype

    # AdaptiveAvgPool1d(1): mean over length, accumulated in f32.
    y = jnp.sum(x, axis=-1, dtype=jnp.float32) * inv_len        # (bt, C) f32

    # fc: Linear -> ReLU -> Linear -> Sigmoid (bias=False), tiny, in f32.
    h = jnp.dot(y, w1t_ref[...].astype(jnp.float32),
                preferred_element_type=jnp.float32)             # (bt, H)
    h = jnp.maximum(h, 0.0)
    s = jnp.dot(h, w2t_ref[...].astype(jnp.float32),
                preferred_element_type=jnp.float32)             # (bt, C)
    s = jax.nn.sigmoid(s)

    # scale: x * y.expand_as(x), multiply in the input dtype.
    o_ref[...] = (x * s[:, :, None].astype(x.dtype)).astype(o_ref.dtype)


def _pick_batch_tile(B, per_batch_bytes, target_bytes=2 * 1024 * 1024):
    """Biggest batch tile <= ~target_bytes that still leaves >= 2 grid steps."""
    bt = max(1, min(B, target_bytes // max(per_batch_bytes, 1)))
    if B >= 2:
        bt = max(1, min(bt, B // 2))   # keep >= 2 steps for v7x megacore
    return int(bt)


def se_layer(x, w1, w2):
    """x: (B, C, L); w1: (H, C); w2: (C, H) (PyTorch Linear layout, bias=False)."""
    B, C, L = x.shape
    H = w1.shape[0]
    w1t = jnp.asarray(w1).T        # (C, H)
    w2t = jnp.asarray(w2).T        # (H, C)

    per_batch_bytes = C * L * x.dtype.itemsize
    bt = _pick_batch_tile(B, per_batch_bytes)
    grid = (pl.cdiv(B, bt),)

    # Double-buffered in + out x blocks plus weights, with headroom; floored
    # at 16 MiB and capped at 48 MiB so the request also fits v7x's 64 MiB
    # physical VMEM.
    block_bytes = bt * per_batch_bytes
    w_bytes = (w1t.size + w2t.size) * 4
    vmem_limit = int(min(48 * 1024 * 1024,
                         max(16 * 1024 * 1024,
                             4 * block_bytes + 4 * w_bytes + (4 << 20))))

    kernel = functools.partial(_se_kernel, inv_len=1.0 / L)

    return pl.pallas_call(
        kernel,
        out_shape=jax.ShapeDtypeStruct((B, C, L), x.dtype),
        grid_spec=pl.GridSpec(
            grid=grid,
            in_specs=[
                pl.BlockSpec((bt, C, L), lambda b: (b, 0, 0)),
                pl.BlockSpec((C, H), lambda b: (0, 0)),
                pl.BlockSpec((H, C), lambda b: (0, 0)),
            ],
            out_specs=pl.BlockSpec((bt, C, L), lambda b: (b, 0, 0)),
        ),
        compiler_params=pltpu.CompilerParams(
            dimension_semantics=("parallel",),
            vmem_limit_bytes=vmem_limit,
        ),
    )(x, w1t, w2t)


def se_layer_ref(x, w1, w2):
    y = jnp.mean(x, axis=-1)                   # (B, C)
    h = jnp.maximum(y @ w1.T, 0.0)             # (B, H)
    s = jax.nn.sigmoid(h @ w2.T)               # (B, C)
    return x * s[:, :, None]


if __name__ == "__main__":
    # SELayer(channel=16, reduction=4) -> hidden = channel // reduction = 4
    # L = 128 keeps the output block lane-dense (multiple of 128 lanes).
    B, C, L = 4, 16, 128
    reduction = 4
    H = C // 2 if C < reduction else C // reduction

    key = jax.random.PRNGKey(0)
    kx, k1, k2 = jax.random.split(key, 3)
    x = jax.random.normal(kx, (B, C, L), dtype=jnp.float32)
    w1 = jax.random.normal(k1, (H, C), dtype=jnp.float32) * 0.1  # Linear(C->H), bias=False
    w2 = jax.random.normal(k2, (C, H), dtype=jnp.float32) * 0.1  # Linear(H->C), bias=False

    out = jax.block_until_ready(se_layer(x, w1, w2))
    ref = se_layer_ref(x, w1, w2)
    assert out.shape == ref.shape
    assert jnp.allclose(out, ref, atol=1e-5, rtol=1e-5), "mismatch vs reference"
    print("KERNEL_OK")
</pallas_src>

<mosaic_0001>
module attributes {stable_mosaic.version = 11 : i64} {
  func.func @_se_kernel(%arg0: i32, %arg1: memref<2x16x128xf32, #tpu.memory_space<vmem>>, %arg2: memref<16x4xf32, #tpu.memory_space<vmem>>, %arg3: memref<4x16xf32, #tpu.memory_space<vmem>>, %arg4: memref<2x16x128xf32, #tpu.memory_space<vmem>>) attributes {dimension_semantics = [#tpu.dimension_semantics<parallel>], iteration_bounds = array<i64: 2>, scalar_prefetch = 0 : i64, scratch_operands = 0 : i64, tpu.core_type = #tpu.core_type<tc>, window_params = [{transform_indices = @transform_0, window_bounds = array<i64: 2, 16, 128>}, {pipeline_mode = #tpu.pipeline_mode<synchronous>, transform_indices = @transform_1, window_bounds = array<i64: 16, 4>}, {pipeline_mode = #tpu.pipeline_mode<synchronous>, transform_indices = @transform_2, window_bounds = array<i64: 4, 16>}, {transform_indices = @transform_3, window_bounds = array<i64: 2, 16, 128>}]} {
    %c0 = arith.constant 0 : index
    %c0_0 = arith.constant 0 : index
    %c0_1 = arith.constant 0 : index
    %0 = vector.load %arg1[%c0, %c0_0, %c0_1] : memref<2x16x128xf32, #tpu.memory_space<vmem>>, vector<2x16x128xf32>
    %cst = arith.constant dense<0.000000e+00> : vector<2x16xf32>
    %1 = vector.multi_reduction <add>, %0, %cst [2] : vector<2x16x128xf32> to vector<2x16xf32>
    %cst_2 = arith.constant 7.812500e-03 : f32
    %2 = vector.broadcast %cst_2 : f32 to vector<2x16xf32>
    %3 = arith.mulf %1, %2 : vector<2x16xf32>
    %c0_3 = arith.constant 0 : index
    %c0_4 = arith.constant 0 : index
    %4 = vector.load %arg2[%c0_3, %c0_4] : memref<16x4xf32, #tpu.memory_space<vmem>>, vector<16x4xf32>
    %cst_5 = arith.constant dense<0.000000e+00> : vector<2x4xf32>
    %5 = tpu.matmul %3, %4, %cst_5 {dimension_numbers = #tpu.dot_dimension_numbers<[1], [0], [0], [1], [0, 0, 1, 1], [], []>} : vector<2x16xf32>, vector<16x4xf32>, vector<2x4xf32> -> vector<2x4xf32>
    %cst_6 = arith.constant 0.000000e+00 : f32
    %6 = vector.broadcast %cst_6 : f32 to vector<2x4xf32>
    %7 = arith.maximumf %5, %6 : vector<2x4xf32>
    %c0_7 = arith.constant 0 : index
    %c0_8 = arith.constant 0 : index
    %8 = vector.load %arg3[%c0_7, %c0_8] : memref<4x16xf32, #tpu.memory_space<vmem>>, vector<4x16xf32>
    %cst_9 = arith.constant dense<0.000000e+00> : vector<2x16xf32>
    %9 = tpu.matmul %7, %8, %cst_9 {dimension_numbers = #tpu.dot_dimension_numbers<[1], [0], [0], [1], [0, 0, 1, 1], [], []>} : vector<2x4xf32>, vector<4x16xf32>, vector<2x16xf32> -> vector<2x16xf32>
    %10 = arith.negf %9 : vector<2x16xf32>
    %11 = math.exp %10 : vector<2x16xf32>
    %cst_10 = arith.constant 1.000000e+00 : f32
    %12 = vector.broadcast %cst_10 : f32 to vector<2x16xf32>
    %13 = arith.addf %12, %11 : vector<2x16xf32>
    %14 = arith.divf %12, %13 : vector<2x16xf32>
    %15 = vector.shape_cast %14 : vector<2x16xf32> to vector<2x16x1xf32>
    %16 = vector.broadcast %15 : vector<2x16x1xf32> to vector<2x16x128xf32>
    %17 = arith.mulf %0, %16 : vector<2x16x128xf32>
    %c0_11 = arith.constant 0 : index
    %c0_12 = arith.constant 0 : index
    %c0_13 = arith.constant 0 : index
    %18 = vector.load %arg4[%c0_11, %c0_12, %c0_13] : memref<2x16x128xf32, #tpu.memory_space<vmem>>, vector<2x16x128xf32>
    tpu.vector_store %arg4[%c0_11, %c0_12, %c0_13], %17 {strides = array<i32>} : memref<2x16x128xf32, #tpu.memory_space<vmem>>, vector<2x16x128xf32>,
    return
  }
  func.func @transform_0(%arg0: i32) -> (i32, i32, i32) {
    %c0_i32 = arith.constant 0 : i32
    %c0_i32_0 = arith.constant 0 : i32
    %c0_i32_1 = arith.constant 0 : i32
    return %arg0, %c0_i32, %c0_i32_0 : i32, i32, i32
  }
  func.func @transform_1(%arg0: i32) -> (i32, i32) {
    %c0_i32 = arith.constant 0 : i32
    %c0_i32_0 = arith.constant 0 : i32
    %c0_i32_1 = arith.constant 0 : i32
    return %c0_i32, %c0_i32_0 : i32, i32
  }
  func.func @transform_2(%arg0: i32) -> (i32, i32) {
    %c0_i32 = arith.constant 0 : i32
    %c0_i32_0 = arith.constant 0 : i32
    %c0_i32_1 = arith.constant 0 : i32
    return %c0_i32, %c0_i32_0 : i32, i32
  }
  func.func @transform_3(%arg0: i32) -> (i32, i32, i32) {
    %c0_i32 = arith.constant 0 : i32
    %c0_i32_0 = arith.constant 0 : i32
    %c0_i32_1 = arith.constant 0 : i32
    return %arg0, %c0_i32, %c0_i32_0 : i32, i32, i32
  }
}

</mosaic_0001>

<llo_original>
// kernel: tpu_custom_call.1
$region0: #{tpu_custom_call.1}
  #allocation0 [shape = 'u32[]', space=smem, size = 0x4, offset = 0x4, fixed_abs, tag = 'smem constant byte address 0x4 - core index']
  #allocation1 [shape = 'u32[144,128]{1,0:T(1,128)}', space=vmem, size = 0x12000, scoped, tag = 'internal scratch']
  %s0 = inlined_call_operand.hbm [shape: f32[4,16,128], index: 0, kind: input, shape index: {}]
  %s1 = inlined_call_operand.vmem [shape: f32[16,4], index: 1, kind: input, shape index: {}]
  %s2 = inlined_call_operand.vmem [shape: f32[4,16], index: 2, kind: input, shape index: {}]
  %s3 = inlined_call_operand.hbm [shape: f32[4,16,128], index: 3, kind: output, shape index: {}]
  %s4 = sld [smem:[#allocation0]]
  $region49: #{tpu_custom_call.1} parent=0
    _
  %s6 = ssub.s32 1, %s4
  %s7 = scalar_select 0, %s6, %s4
  $region1: #{tpu_custom_call.1} parent=0
    #allocation2 [shape = 'u8[32768]{0}', space=vmem, size = 0x8000, scoped, tag = 'input window, operand 0']
    #allocation3 [shape = 's32[2]{0}', space=sflag, size = 0x8, scoped, tag = 'scoped memory for tpu_custom_call.1']
    #allocation4 [shape = 's32[2]{0}', space=sflag, size = 0x8, scoped, tag = 'scoped memory for tpu_custom_call.1']
    #allocation5 [shape = 'u8[32768]{0}', space=vmem, size = 0x8000, scoped, tag = 'output window, operand 0']
    %8 = vsyncpa [#allocation3], 0
    %s9 = scalar_lea.sflag [#allocation3], 1
    %10 = vsyncpa %s9, 0
    %11 = vsyncpa [#allocation4], 0
    %s12 = scalar_lea.sflag [#allocation4], 1
    %13 = vsyncpa %s12, 0
    loop: start=0, step=1, limit=4
    $region2: #{tpu_custom_call.1} parent=1 // loop_pre_header
      _
    $region3: #{tpu_custom_call.1} parent=1 // loop_header
      %s15 = sphi 0, %s19
      %p16 = scmp.ge.s32.totalorder %s15, 4
      %s25 = sphi 0, %s27
      %s28 = sphi 0, %s25
      %s29 = sphi 0, %s28
      %s45 = sphi 0, %s29
      %s49 = sphi 0, %s49
      %s51 = sphi 0, %s49
      %s52 = sphi 0, %s51
      %s66 = sphi 0, %s52
      %s70 = sphi 0, %s70
      %s72 = sphi 0, %s70
      %s73 = sphi 0, %s72
      %s87 = sphi 0, %s73
      %s93 = sphi 0, %s95
      %s96 = sphi 0, %s93
      %s97 = sphi 0, %s96
      %s113 = sphi 0, %s97
    $region4: #{tpu_custom_call.1} parent=1 // loop_header_branch
      %18 = sbr.rel (%p16) target = $region8
    $region5: #{tpu_custom_call.1} parent=1 // loop_body
      %s20 = ssub.s32 %s15, 1
      %s21 = ssub.s32 %s15, 2
      %s22 = sadd.s32 %s15, 1
      %s23 = ssub.s32 %s15, %s22
      %p24 = scmp.eq.s32.totalorder %s23, 0
      %s26 = sadd.s32 %s25, 1
      %s27 = scalar_select %p24, %s25, %s26
      %p30 = pneg %p24
      %p31 = scmp.eq.s32.totalorder %s15, 1
      %p32 = por %p30, %p31
      %p33 = scmp.ne.s32.totalorder %s25, %s28
      %p34 = scmp.eq.s32.totalorder %s15, 0
      %p35 = por %p33, %p34
      %p36 = scmp.ne.s32.totalorder %s25, %s28
      %p37 = scmp.eq.s32.totalorder %s20, 1
      %p38 = por %p36, %p37
      %p39 = scmp.ne.s32.totalorder %s28, %s29
      %p40 = scmp.eq.s32.totalorder %s20, 0
      %p41 = por %p39, %p40
      %p42 = scmp.ne.s32.totalorder %s28, %s29
      %p43 = scmp.eq.s32.totalorder %s21, 1
      %p44 = por %p42, %p43
      %p46 = scmp.ne.s32.totalorder %s29, %s45
      %p47 = scmp.eq.s32.totalorder %s21, 0
      %p48 = por %p46, %p47
      %s50 = sadd.s32 %s49, 1
      %p53 = scmp.eq.s32.totalorder %s15, 1
      %p54 = scmp.ne.s32.totalorder %s49, %s51
      %p55 = scmp.eq.s32.totalorder %s15, 0
      %p56 = por %p54, %p55
      %p57 = scmp.ne.s32.totalorder %s49, %s51
      %p58 = scmp.eq.s32.totalorder %s20, 1
      %p59 = por %p57, %p58
      %p60 = scmp.ne.s32.totalorder %s51, %s52
      %p61 = scmp.eq.s32.totalorder %s20, 0
      %p62 = por %p60, %p61
      %p63 = scmp.ne.s32.totalorder %s51, %s52
      %p64 = scmp.eq.s32.totalorder %s21, 1
      %p65 = por %p63, %p64
      %p67 = scmp.ne.s32.totalorder %s52, %s66
      %p68 = scmp.eq.s32.totalorder %s21, 0
      %p69 = por %p67, %p68
      %s71 = sadd.s32 %s70, 1
      %p74 = scmp.eq.s32.totalorder %s15, 1
      %p75 = scmp.ne.s32.totalorder %s70, %s72
      %p76 = scmp.eq.s32.totalorder %s15, 0
      %p77 = por %p75, %p76
      %p78 = scmp.ne.s32.totalorder %s70, %s72
      %p79 = scmp.eq.s32.totalorder %s20, 1
      %p80 = por %p78, %p79
      %p81 = scmp.ne.s32.totalorder %s72, %s73
      %p82 = scmp.eq.s32.totalorder %s20, 0
      %p83 = por %p81, %p82
      %p84 = scmp.ne.s32.totalorder %s72, %s73
      %p85 = scmp.eq.s32.totalorder %s21, 1
      %p86 = por %p84, %p85
      %p88 = scmp.ne.s32.totalorder %s73, %s87
      %p89 = scmp.eq.s32.totalorder %s21, 0
      %p90 = por %p88, %p89
      %s91 = ssub.s32 %s15, %s22
      %p92 = scmp.eq.s32.totalorder %s91, 0
      %s94 = sadd.s32 %s93, 1
      %s95 = scalar_select %p92, %s93, %s94
      %p98 = pneg %p92
      %p99 = scmp.eq.s32.totalorder %s15, 1
      %p100 = por %p98, %p99
      %p101 = scmp.ne.s32.totalorder %s93, %s96
      %p102 = scmp.eq.s32.totalorder %s15, 0
      %p103 = por %p101, %p102
      %p104 = scmp.ne.s32.totalorder %s93, %s96
      %p105 = scmp.eq.s32.totalorder %s20, 1
      %p106 = por %p104, %p105
      %p107 = scmp.ne.s32.totalorder %s96, %s97
      %p108 = scmp.eq.s32.totalorder %s20, 0
      %p109 = por %p107, %p108
      %p110 = scmp.ne.s32.totalorder %s96, %s97
      %p111 = scmp.eq.s32.totalorder %s21, 1
      %p112 = por %p110, %p111
      %p114 = scmp.ne.s32.totalorder %s97, %s113
      %p115 = scmp.eq.s32.totalorder %s21, 0
      %p116 = por %p114, %p115
      %p117 = scmp.le.s32.totalorder 1, %s15
      %p118 = scmp.lt.s32.totalorder %s15, 3
      %p119 = pnand %p117, %p118
      %p120 = pneg %p119
      // Predicated region
      $region9: #{tpu_custom_call.1} parent=5 // pred_check
        _
      $region10: #{tpu_custom_call.1} parent=5 // pred_check_branch
        %122 = sbr.rel (%p119) target = $region12
      $region11: #{tpu_custom_call.1} parent=5 // pred_region
        %s123 = ssub.s32 %s15, 1
        // Predicated region
        $region13: #{tpu_custom_call.1} parent=11 // pred_check
          %p124 = pneg %p62
        $region14: #{tpu_custom_call.1} parent=11 // pred_check_branch
          %126 = sbr.rel (%p124) target = $region16
        $region15: #{tpu_custom_call.1} parent=11 // pred_region
          _
        $region16: #{tpu_custom_call.1} parent=11 // pred_fallthru
          _
        // Predicated region
        $region17: #{tpu_custom_call.1} parent=11 // pred_check
          %p127 = pneg %p83
        $region18: #{tpu_custom_call.1} parent=11 // pred_check_branch
          %129 = sbr.rel (%p127) target = $region20
        $region19: #{tpu_custom_call.1} parent=11 // pred_region
          _
        $region20: #{tpu_custom_call.1} parent=11 // pred_fallthru
          _
      $region12: #{tpu_custom_call.1} parent=5 // pred_fallthru
        _
      %p130 = scmp.lt.s32.totalorder %s15, 2
      // Predicated region
      $region21: #{tpu_custom_call.1} parent=5 // pred_check
        %p131 = pneg %p130
      $region22: #{tpu_custom_call.1} parent=5 // pred_check_branch
        %133 = sbr.rel (%p131) target = $region24
      $region23: #{tpu_custom_call.1} parent=5 // pred_region
        // Predicated region
        $region25: #{tpu_custom_call.1} parent=23 // pred_check
          %p134 = pneg %p35
        $region26: #{tpu_custom_call.1} parent=23 // pred_check_branch
          %136 = sbr.rel (%p134) target = $region28
        $region27: #{tpu_custom_call.1} parent=23 // pred_region
          %s137 = sand.u32 %s25, 1
          %s138 = scalar_lea.sflag [#allocation3], %s137
          %s139 = sand.u32 %s25, 1
          %s140 = smul.addr %s139, 32
          %s141 = scalar_lea.vmem [#allocation2], %s140
          %s142 = smul.u32 2, %s15
          %s144 = ssub.s32 512, 512
          %145 = vsyncadd %s138, %s144
          %s146 = smul.addr %s142, 2
          %s147 = smul.addr %s146, 128
          %s148 = scalar_lea.hbm %s0, %s147
          %s149 = sshll.u32 %s141, 4
          %s150 = int_to_ptr.vmem [resolvable:$true] %s149
          %155 = dma.hbm_to_vmem [thread:$0]  %s148, 512, %s150, %s138, 128, 128, 8
        $region28: #{tpu_custom_call.1} parent=23 // pred_fallthru
          _
      $region24: #{tpu_custom_call.1} parent=5 // pred_fallthru
        _
      %p156 = scmp.le.s32.totalorder 1, %s15
      %p157 = scmp.lt.s32.totalorder %s15, 3
      %p158 = pnand %p156, %p157
      %p159 = pneg %p158
      // Predicated region
      $region29: #{tpu_custom_call.1} parent=5 // pred_check
        _
      $region30: #{tpu_custom_call.1} parent=5 // pred_check_branch
        %161 = sbr.rel (%p158) target = $region32
      $region31: #{tpu_custom_call.1} parent=5 // pred_region
        %s162 = ssub.s32 %s15, 1
        %s163 = sand.u32 %s28, 1
        %s164 = scalar_lea.sflag [#allocation3], %s163
        %s165 = sand.u32 %s28, 1
        %s166 = smul.addr %s165, 32
        %s167 = scalar_lea.vmem [#allocation2], %s166
        // Predicated region
        $region33: #{tpu_custom_call.1} parent=31 // pred_check
          %p168 = pneg %p41
        $region34: #{tpu_custom_call.1} parent=31 // pred_check_branch
          %170 = sbr.rel (%p168) target = $region36
        $region35: #{tpu_custom_call.1} parent=31 // pred_region
          %171 = dma.done %s164, 512
        $region36: #{tpu_custom_call.1} parent=31 // pred_fallthru
          _
        %s172 = sand.u32 %s28, 1
        %s173 = scalar_lea.sflag [#allocation3], %s172
        %s174 = sand.u32 %s28, 1
        %s175 = smul.addr %s174, 32
        %s176 = scalar_lea.vmem [#allocation2], %s175
        %p177 = pneg %p41
        %p178 = pneg %p38
        %p179 = pneg %p62
        %p180 = pneg %p59
        %p181 = pneg %p83
        %p182 = pneg %p80
        %p183 = pneg %p109
        %p184 = pneg %p106
        %s185 = sand.u32 %s96, 1
        %s186 = scalar_lea.sflag [#allocation4], %s185
        %s187 = sand.u32 %s96, 1
        %s188 = smul.addr %s187, 32
        %s189 = scalar_lea.vmem [#allocation5], %s188
        %s190 = smul.u32 2, %s20
        %s191 = smul.u32 2, %s20
        %v192 = vld [vmem:[%s167] sm:$0xff]
        %v193 = vld [vmem:[%s167 + $0x8] sm:$0xff]
        %v194 = vld [vmem:[%s167 + $0x10] sm:$0xff]
        %v195 = vld [vmem:[%s167 + $0x18] sm:$0xff]
        %196 = vadd.xlane.f32.xlu0 %v192
        %v197 = vpop.xlane.xlu0 %196
        %198 = vadd.xlane.f32.xlu0 %v193
        %v199 = vpop.xlane.xlu0 %198
        %200 = vadd.xlane.f32.xlu0 %v194
        %v201 = vpop.xlane.xlu0 %200
        %202 = vadd.xlane.f32.xlu0 %v195
        %v203 = vpop.xlane.xlu0 %202
        %v204 = vmul.f32 %v197, 0.0078125
        %v205 = vmul.f32 %v199, 0.0078125
        %v206 = vmul.f32 %v201, 0.0078125
        %v207 = vmul.f32 %v203, 0.0078125
        %v208 = vld [vmem:[%s1] sm:$0xff]
        %v209 = vld [vmem:[%s1 + $0x8] sm:$0xff]
        %v214 = vlaneseq
        %v215 = vand.u32 %v214, 127
        %v216 = vlaneseq
        %v217 = vshrl.u32 %v216, 7
        %v218 = vsub.s32 %v215, %v217
        %v219 = vrot.slane %v204, %v218
        %v220 = vadd.s32 %v215, 4294967288
        %v221 = vlaneseq
        %v222 = vshrl.u32 %v221, 7
        %v223 = vsub.s32 %v220, %v222
        %v224 = vrot.slane %v205, %v223
        %vm225 = vcmask 130112
        %v226 = vsel %vm225, %v224, %v219
        %v227 = vlaneseq
        %v228 = vshrl.u32 %v227, 7
        %v229 = vsub.s32 %v215, %v228
        %v230 = vrot.slane %v206, %v229
        %v231 = vlaneseq
        %v232 = vshrl.u32 %v231, 7
        %v233 = vsub.s32 %v220, %v232
        %v234 = vrot.slane %v207, %v233
        %v235 = vsel %vm225, %v234, %v230
        %vm236 = vcmask 1041409
        %v237 = vsel %vm236, %v235, %v226
        %vm238 = vcmask 130048
        %v239 = vsel %vm238, %v237, 0
        %241 = vmatprep.subr.mxu0 0.0
        %242 = vmatpush1.msra.mxu0 %v208
        %243 = vmatprep.subr.mxu0 0.0
        %244 = vmatpush1.msra.mxu0 %v209
        %245 = vmatprep.subr.mxu0 0.0
        %246 = vmatpush1.msra.mxu0 0.0
        %247 = vmatprep.subr.mxu0 0.0
        %248 = vmatpush1.msra.mxu0 0.0
        %249 = vmatprep.subr.mxu0 0.0
        %250 = vmatpush1.msra.mxu0 0.0
        %251 = vmatprep.subr.mxu0 0.0
        %252 = vmatpush1.msra.mxu0 0.0
        %253 = vmatprep.subr.mxu0 0.0
        %254 = vmatpush1.msra.mxu0 0.0
        %255 = vmatprep.subr.mxu0 0.0
        %256 = vmatpush1.msra.mxu0 0.0
        %257 = vmatprep.subr.mxu0 0.0
        %258 = vmatpush1.msra.mxu0 0.0
        %259 = vmatprep.subr.mxu0 0.0
        %260 = vmatpush1.msra.mxu0 0.0
        %261 = vmatprep.subr.mxu0 0.0
        %262 = vmatpush1.msra.mxu0 0.0
        %263 = vmatprep.subr.mxu0 0.0
        %264 = vmatpush1.msra.mxu0 0.0
        %265 = vmatprep.subr.mxu0 0.0
        %266 = vmatpush1.msra.mxu0 0.0
        %267 = vmatprep.subr.mxu0 0.0
        %268 = vmatpush1.msra.mxu0 0.0
        %269 = vmatprep.subr.mxu0 0.0
        %270 = vmatpush1.msra.mxu0 0.0
        %271 = vmatprep.subr.mxu0 0.0
        %272 = vmatpush1.msra.mxu0 0.0
        %273 = vmatprep.subr.mxu0 0.0
        %274 = vmatpush1.msra.mxu0 0.0
        %275 = vmatprep.subr.mxu0 0.0
        %276 = vmatpush1.msra.mxu0 0.0
        %277 = vmatprep.subr.mxu0 0.0
        %278 = vmatpush1.msra.mxu0 0.0
        %279 = vmatprep.subr.mxu0 0.0
        %280 = vmatpush1.msra.mxu0 0.0
        %281 = vmatprep.subr.mxu0 0.0
        %282 = vmatpush1.msra.mxu0 0.0
        %283 = vmatprep.subr.mxu0 0.0
        %284 = vmatpush1.msra.mxu0 0.0
        %285 = vmatprep.subr.mxu0 0.0
        %286 = vmatpush1.msra.mxu0 0.0
        %287 = vmatprep.subr.mxu0 0.0
        %288 = vmatpush1.msra.mxu0 0.0
        %289 = vmatprep.subr.mxu0 0.0
        %290 = vmatpush1.msra.mxu0 0.0
        %291 = vmatprep.subr.mxu0 0.0
        %292 = vmatpush1.msra.mxu0 0.0
        %293 = vmatprep.subr.mxu0 0.0
        %294 = vmatpush1.msra.mxu0 0.0
        %295 = vmatprep.subr.mxu0 0.0
        %296 = vmatpush1.msra.mxu0 0.0
        %297 = vmatprep.subr.mxu0 0.0
        %298 = vmatpush1.msra.mxu0 0.0
        %299 = vmatprep.subr.mxu0 0.0
        %300 = vmatpush1.msra.mxu0 0.0
        %301 = vmatprep.subr.mxu0 0.0
        %302 = vmatpush1.msra.mxu0 0.0
        %303 = vmatprep.subr.mxu0 0.0
        %304 = vmatpush1.msra.mxu0 0.0
        %305 = vmatprep.mubr.f32.mxu0 0.0
        %306 = vmatmul.mubr.f32.gmra.mrb[0].mxu0 %v239
        %v307 = vpop.f32.mrb[0].mxu0
        %v308 = vadd.f32 0.0, %v307
        %v309 = vpop.f32.mrb[0].mxu0
        %310 = vdwg.mxu0
        %v311 = vmax.f32 %v308, 0.0
        %v312 = vld [vmem:[%s2] sm:$0xf]
        %vm313 = vcmask 31744
        %v315 = vsel %vm313, %v311, 0
        %vm317 = vcmask 1043456
        %v319 = vsel %vm317, %v312, 0
        %321 = vmatprep.subr.mxu0 0.0
        %322 = vmatpush1.msra.mxu0 %v319
        %323 = vmatprep.subr.mxu0 0.0
        %324 = vmatpush1.msra.mxu0 0.0
        %325 = vmatprep.subr.mxu0 0.0
        %326 = vmatpush1.msra.mxu0 0.0
        %327 = vmatprep.subr.mxu0 0.0
        %328 = vmatpush1.msra.mxu0 0.0
        %329 = vmatprep.subr.mxu0 0.0
        %330 = vmatpush1.msra.mxu0 0.0
        %331 = vmatprep.subr.mxu0 0.0
        %332 = vmatpush1.msra.mxu0 0.0
        %333 = vmatprep.subr.mxu0 0.0
        %334 = vmatpush1.msra.mxu0 0.0
        %335 = vmatprep.subr.mxu0 0.0
        %336 = vmatpush1.msra.mxu0 0.0
        %337 = vmatprep.subr.mxu0 0.0
        %338 = vmatpush1.msra.mxu0 0.0
        %339 = vmatprep.subr.mxu0 0.0
        %340 = vmatpush1.msra.mxu0 0.0
        %341 = vmatprep.subr.mxu0 0.0
        %342 = vmatpush1.msra.mxu0 0.0
        %343 = vmatprep.subr.mxu0 0.0
        %344 = vmatpush1.msra.mxu0 0.0
        %345 = vmatprep.subr.mxu0 0.0
        %346 = vmatpush1.msra.mxu0 0.0
        %347 = vmatprep.subr.mxu0 0.0
        %348 = vmatpush1.msra.mxu0 0.0
        %349 = vmatprep.subr.mxu0 0.0
        %350 = vmatpush1.msra.mxu0 0.0
        %351 = vmatprep.subr.mxu0 0.0
        %352 = vmatpush1.msra.mxu0 0.0
        %353 = vmatprep.subr.mxu0 0.0
        %354 = vmatpush1.msra.mxu0 0.0
        %355 = vmatprep.subr.mxu0 0.0
        %356 = vmatpush1.msra.mxu0 0.0
        %357 = vmatprep.subr.mxu0 0.0
        %358 = vmatpush1.msra.mxu0 0.0
        %359 = vmatprep.subr.mxu0 0.0
        %360 = vmatpush1.msra.mxu0 0.0
        %361 = vmatprep.subr.mxu0 0.0
        %362 = vmatpush1.msra.mxu0 0.0
        %363 = vmatprep.subr.mxu0 0.0
        %364 = vmatpush1.msra.mxu0 0.0
        %365 = vmatprep.subr.mxu0 0.0
        %366 = vmatpush1.msra.mxu0 0.0
        %367 = vmatprep.subr.mxu0 0.0
        %368 = vmatpush1.msra.mxu0 0.0
        %369 = vmatprep.subr.mxu0 0.0
        %370 = vmatpush1.msra.mxu0 0.0
        %371 = vmatprep.subr.mxu0 0.0
        %372 = vmatpush1.msra.mxu0 0.0
        %373 = vmatprep.subr.mxu0 0.0
        %374 = vmatpush1.msra.mxu0 0.0
        %375 = vmatprep.subr.mxu0 0.0
        %376 = vmatpush1.msra.mxu0 0.0
        %377 = vmatprep.subr.mxu0 0.0
        %378 = vmatpush1.msra.mxu0 0.0
        %379 = vmatprep.subr.mxu0 0.0
        %380 = vmatpush1.msra.mxu0 0.0
        %381 = vmatprep.subr.mxu0 0.0
        %382 = vmatpush1.msra.mxu0 0.0
        %383 = vmatprep.subr.mxu0 0.0
        %384 = vmatpush1.msra.mxu0 0.0
        %385 = vmatprep.mubr.f32.mxu0 0.0
        %386 = vmatmul.mubr.f32.gmra.mrb[0].mxu0 %v315
        %v387 = vpop.f32.mrb[0].mxu0
        %v388 = vadd.f32 0.0, %v387
        %v389 = vpop.f32.mrb[0].mxu0
        %390 = vdwg.mxu0
        %v391 = vxor.u32 %v388, 2147483648
        %v392 = vmul.f32 %v391, 1.442695
        %v393 = vpow.pop %v392
        %v394 = vadd.f32 %v393, 1.0
        %v395 = vrcp.pop %v394
        %v396 = vmul.f32 1.0, %v395
        %v397 = vlaneseq
        %v398 = vshrl.u32 %v397, 7
        %v399 = vsub.s32 0, %v398
        %v400 = vrot.slane %v396, %v399
        %402 = vbcast.lane.b32.xlu0 %v400, 256
        %v403 = vpop.permute.xlu0 %402
        %s405 = sor.u32 256, 8
        %406 = vbcast.lane.b32.xlu0 %v400, %s405
        %v407 = vpop.permute.xlu0 %406
        %v408 = vlaneseq
        %v409 = vshrl.u32 %v408, 7
        %v410 = vsub.s32 1, %v409
        %v411 = vrot.slane %v396, %v410
        %413 = vbcast.lane.b32.xlu0 %v411, 256
        %v414 = vpop.permute.xlu0 %413
        %s416 = sor.u32 256, 8
        %417 = vbcast.lane.b32.xlu0 %v411, %s416
        %v418 = vpop.permute.xlu0 %417
        %v419 = vmul.f32 %v192, %v403
        %v420 = vmul.f32 %v193, %v407
        %v421 = vmul.f32 %v194, %v414
        %v422 = vmul.f32 %v195, %v418
        %423 = vst [vmem:[%s189] sm:$0xff] %v419
        %424 = vst [vmem:[%s189 + $0x8] sm:$0xff] %v420
        %425 = vst [vmem:[%s189 + $0x10] sm:$0xff] %v421
        %426 = vst [vmem:[%s189 + $0x18] sm:$0xff] %v422
        %s427 = sand.u32 %s96, 1
        %s428 = scalar_lea.sflag [#allocation4], %s427
        %s429 = sand.u32 %s96, 1
        %s430 = smul.addr %s429, 32
        %s431 = scalar_lea.vmem [#allocation5], %s430
        // Predicated region
        $region37: #{tpu_custom_call.1} parent=31 // pred_check
          %p432 = pneg %p106
        $region38: #{tpu_custom_call.1} parent=31 // pred_check_branch
          %434 = sbr.rel (%p432) target = $region40
        $region39: #{tpu_custom_call.1} parent=31 // pred_region
          %s435 = smul.u32 2, %s20
          %s437 = ssub.s32 512, 512
          %438 = vsyncadd %s428, %s437
          %s439 = smul.addr %s435, 2
          %s440 = smul.addr %s439, 128
          %s441 = scalar_lea.hbm %s3, %s440
          %s442 = sshll.u32 %s431, 4
          %s443 = int_to_ptr.vmem [resolvable:$true] %s442
          %448 = dma.vmem_to_hbm [thread:$0]  %s443, 512, %s441, %s428, 128, 128, 8
        $region40: #{tpu_custom_call.1} parent=31 // pred_fallthru
          _
      $region32: #{tpu_custom_call.1} parent=5 // pred_fallthru
        _
      %p449 = scmp.le.s32.totalorder 2, %s15
      // Predicated region
      $region41: #{tpu_custom_call.1} parent=5 // pred_check
        %p450 = pneg %p449
      $region42: #{tpu_custom_call.1} parent=5 // pred_check_branch
        %452 = sbr.rel (%p450) target = $region44
      $region43: #{tpu_custom_call.1} parent=5 // pred_region
        %s453 = ssub.s32 %s15, 2
        // Predicated region
        $region45: #{tpu_custom_call.1} parent=43 // pred_check
          %p454 = pneg %p112
        $region46: #{tpu_custom_call.1} parent=43 // pred_check_branch
          %456 = sbr.rel (%p454) target = $region48
        $region47: #{tpu_custom_call.1} parent=43 // pred_region
          %s457 = sand.u32 %s97, 1
          %s458 = scalar_lea.sflag [#allocation4], %s457
          %s459 = sand.u32 %s97, 1
          %s460 = smul.addr %s459, 32
          %s461 = scalar_lea.vmem [#allocation5], %s460
          %462 = dma.done %s458, 512
        $region48: #{tpu_custom_call.1} parent=43 // pred_fallthru
          _
      $region44: #{tpu_custom_call.1} parent=5 // pred_fallthru
        _
    $region6: #{tpu_custom_call.1} parent=1 // loop_footer
      %s19 = sadd.s32 1, %s15
    $region7: #{tpu_custom_call.1} parent=1 // loop_footer_branch
      %14 = sbr.rel target = $region3
    $region8: #{tpu_custom_call.1} parent=1 // loop_exit
      _
    %463 = vsyncpa [#allocation3], 1
    %s464 = scalar_lea.sflag [#allocation3], 1
    %465 = vsyncpa %s464, 1
    %466 = vsyncpa [#allocation4], 1
    %s467 = scalar_lea.sflag [#allocation4], 1
    %468 = vsyncpa %s467, 1

</llo_original>
